<compile_context>
chip_gen: v7x
topology: tpu7x:2x2x1
jax: 0.10.0
libtpu: 0.0.40
codegen_flags: <defaults>
</compile_context>

<pallas_src>
import jax
import jax.numpy as jnp
from jax import lax
from jax.experimental import pallas as pl
from jax.experimental.pallas import tpu as pltpu


def _partition_kernel(prob_ref, noise_ref, omega_ref, lam_ref, inv_ref):
    # Block shapes (HW lane-dense, CK sublane-dense; rows are contrast-major,
    # coil-minor so row c*K + k belongs to contrast c):
    #   prob_ref : (C_T, HW)       f32   ACS-clamped sampling probability
    #   noise_ref: (1, C_T, HW)    f32   uniform(0,1) noise for this batch item
    #   omega_ref: (1, C_T*K, HW)  omega dtype (bf16 or f32)
    #   lam_ref  : (1, C_T*K, HW)
    #   inv_ref  : (1, C_T*K, HW)
    c_t, hw = prob_ref.shape
    ck = omega_ref.shape[1]
    k = ck // c_t

    # Bernoulli-style activation; compare is done in f32.
    diff = prob_ref[...] - noise_ref[0]                       # (C_T, HW) f32

    # Expand per-contrast rows to per-(contrast, coil) rows without any
    # gather: sublane broadcast of each contrast row to K rows, concatenated.
    if k == 1:
        diff_rep = diff
    else:
        diff_rep = jnp.concatenate(
            [jnp.broadcast_to(diff[c:c + 1, :], (k, hw)) for c in range(c_t)],
            axis=0)                                           # (C_T*K, HW)

    omega = omega_ref[0]                                      # (C_T*K, HW)
    lam = jnp.where(diff_rep > 0, omega, jnp.zeros_like(omega))
    lam_ref[0] = lam
    inv_ref[0] = omega - lam          # exact: mask is hard 0/1


def _choose_c_tile(C, K, HW, itemsize, vmem_budget_bytes):
    """Largest contrast tile (divisor of C) whose double-buffered VMEM
    footprint fits the budget.  Partial tiles keep block rows a multiple of 8
    (the (8,128) block rule); if no such divisor exists we fall back to the
    whole-C slab and rely on vmem_limit_bytes."""
    def step_bytes(c):
        ck = c * K
        # prob + noise (f32) + omega + lam + inv, each double-buffered.
        return 2 * (2 * c * HW * 4 + 3 * ck * HW * itemsize)

    candidates = [C] + [d for d in range(C - 1, 0, -1)
                        if C % d == 0 and d % 8 == 0 and (d * K) % 8 == 0]
    for c in candidates:
        if step_bytes(c) <= vmem_budget_bytes:
            return c
    return candidates[-1]


def learn_partitioning_forward(omega_mask, sampling_weights, noise,
                               sigmoid_slope_probability: float = 5.0,
                               vmem_budget_bytes: int = 40 << 20):
    """omega_mask: (B, C, K, H, W); sampling_weights: (C, H, W);
    noise: (B, C, H, W) uniform(0,1).  Returns (lambda_set, inverse_set) in
    omega_mask's dtype (use bfloat16 for a binary omega: exact, half the HBM
    traffic of f32)."""
    B, C, K, H, W = omega_mask.shape
    assert sampling_weights.shape == (C, H, W)
    assert noise.shape == (B, C, H, W)
    # The torch forward hard-codes a 10x10 ACS window; guard against wrap.
    assert H >= 10 and W >= 10, "ACS window (+/-5) requires H, W >= 10"

    HW = H * W
    pad = (-HW) % 128            # keep trailing axis lane-dense (128-multiple)
    HW_p = HW + pad

    # --- Hoisted probability computation (tiny: C*H*W elements) ------------
    prob = jax.nn.sigmoid(sampling_weights.astype(jnp.float32)
                          * sigmoid_slope_probability)
    prob = prob.at[:, H // 2 - 5:H // 2 + 5, W // 2 - 5:W // 2 + 5].set(1.0)

    # --- Lane/sublane-dense layout plumbing (contiguous reshapes) -----------
    prob_r = prob.reshape(C, HW)
    noise_r = noise.astype(jnp.float32).reshape(B, C, HW)
    omega_r = omega_mask.reshape(B, C * K, HW)
    if pad:
        prob_r = jnp.pad(prob_r, ((0, 0), (0, pad)))
        noise_r = jnp.pad(noise_r, ((0, 0), (0, 0), (0, pad)))
        omega_r = jnp.pad(omega_r, ((0, 0), (0, 0), (0, pad)))

    c_tile = _choose_c_tile(C, K, HW_p, omega_r.dtype.itemsize,
                            vmem_budget_bytes)
    n_ct = C // c_tile
    ck_tile = c_tile * K

    out_shape = (jax.ShapeDtypeStruct((B, C * K, HW_p), omega_r.dtype),
                 jax.ShapeDtypeStruct((B, C * K, HW_p), omega_r.dtype))

    lam, inv = pl.pallas_call(
        _partition_kernel,
        grid=(B, n_ct),
        in_specs=[
            pl.BlockSpec((c_tile, HW_p), lambda b, t: (t, 0)),
            pl.BlockSpec((1, c_tile, HW_p), lambda b, t: (b, t, 0)),
            pl.BlockSpec((1, ck_tile, HW_p), lambda b, t: (b, t, 0)),
        ],
        out_specs=[
            pl.BlockSpec((1, ck_tile, HW_p), lambda b, t: (b, t, 0)),
            pl.BlockSpec((1, ck_tile, HW_p), lambda b, t: (b, t, 0)),
        ],
        out_shape=out_shape,
        compiler_params=pltpu.CompilerParams(
            dimension_semantics=("parallel", "parallel"),
            vmem_limit_bytes=48 * 1024 * 1024),
    )(prob_r, noise_r, omega_r)

    if pad:
        lam = lam[..., :HW]
        inv = inv[..., :HW]
    return lam.reshape(B, C, K, H, W), inv.reshape(B, C, K, H, W)


def make_sampling_weights(image_size, k_center_region=10,
                          sigmoid_slope_probability=5.0):
    """Deterministic parameter init mirroring _setup_sampling_weights with
    is_warm_start=False (fully specified, no external gen_pdf_* dependency)."""
    C, H, W = image_size
    init_prob = jnp.full((C, H, W), 0.5, dtype=jnp.float32)
    half = k_center_region // 2
    rows = lax.broadcasted_iota(jnp.int32, (H, W), 0)
    cols = lax.broadcasted_iota(jnp.int32, (H, W), 1)
    center = ((rows >= H // 2 - half) & (rows < H // 2 + half) &
              (cols >= W // 2 - half) & (cols < W // 2 + half))
    init_prob = jnp.where(center[None], jnp.float32(0.99), init_prob)
    weights = -jnp.log(1.0 / init_prob - 1.0) / sigmoid_slope_probability
    return weights.astype(jnp.float32)


def _reference_forward(omega_mask, sampling_weights, noise, slope_prob=5.0):
    """Pure-JAX reference mirroring the torch forward (computed in f32)."""
    C, H, W = sampling_weights.shape
    prob = jax.nn.sigmoid(sampling_weights * slope_prob)
    prob = prob.at[:, H // 2 - 5:H // 2 + 5, W // 2 - 5:W // 2 + 5].set(1.0)
    act = prob[None] - noise                                   # (B, C, H, W)
    mask = (act > 0).astype(jnp.float32)[:, :, None]           # (B, C, 1, H, W)
    om = omega_mask.astype(jnp.float32)
    return om * mask, om * (1.0 - mask)


if __name__ == "__main__":
    # Small shapes consistent with the module:
    #   image_size = (contrasts=4, H=16, W=16), batch=2, coils=3
    B, C, K, H, W = 2, 4, 3, 16, 16
    slope_prob = 5.0

    key = jax.random.PRNGKey(0)
    k_omega, k_noise = jax.random.split(key)

    # omega (acquisition) mask: binary -> exact in bfloat16 (halves HBM traffic)
    omega_bits = (jax.random.uniform(k_omega, (B, C, K, H, W)) > 0.5)
    omega_bf16 = omega_bits.astype(jnp.bfloat16)
    omega_f32 = omega_bits.astype(jnp.float32)
    # uniform(0,1) noise == torch.rand in get_mask (generated outside kernel)
    noise = jax.random.uniform(k_noise, (B, C, H, W), dtype=jnp.float32)

    sampling_weights = make_sampling_weights(
        (C, H, W), k_center_region=10, sigmoid_slope_probability=slope_prob)

    lam_ref, inv_ref = _reference_forward(omega_f32, sampling_weights, noise,
                                          slope_prob)

    # bf16 (bandwidth-optimal) path
    lam, inv = learn_partitioning_forward(omega_bf16, sampling_weights, noise,
                                          sigmoid_slope_probability=slope_prob)
    jax.block_until_ready((lam, inv))
    assert jnp.allclose(lam.astype(jnp.float32), lam_ref), "lambda_set mismatch (bf16)"
    assert jnp.allclose(inv.astype(jnp.float32), inv_ref), "inverse_set mismatch (bf16)"
    assert jnp.allclose((lam + inv).astype(jnp.float32), omega_f32), \
        "partition does not sum to omega (bf16)"

    # f32 path (same kernel, wider dtype)
    lam32, inv32 = learn_partitioning_forward(omega_f32, sampling_weights, noise,
                                              sigmoid_slope_probability=slope_prob)
    jax.block_until_ready((lam32, inv32))
    assert jnp.allclose(lam32, lam_ref), "lambda_set mismatch (f32)"
    assert jnp.allclose(inv32, inv_ref), "inverse_set mismatch (f32)"
    assert jnp.allclose(lam32 + inv32, omega_f32), \
        "partition does not sum to omega (f32)"

    print("KERNEL_OK")
</pallas_src>

<mosaic_0001>
module attributes {stable_mosaic.version = 11 : i64} {
  func.func @_partition_kernel(%arg0: i32, %arg1: i32, %arg2: memref<4x256xf32, #tpu.memory_space<vmem>>, %arg3: memref<1x4x256xf32, #tpu.memory_space<vmem>>, %arg4: memref<1x12x256xbf16, #tpu.memory_space<vmem>>, %arg5: memref<1x12x256xbf16, #tpu.memory_space<vmem>>, %arg6: memref<1x12x256xbf16, #tpu.memory_space<vmem>>) attributes {dimension_semantics = [#tpu.dimension_semantics<parallel>, #tpu.dimension_semantics<parallel>], iteration_bounds = array<i64: 2, 1>, scalar_prefetch = 0 : i64, scratch_operands = 0 : i64, tpu.core_type = #tpu.core_type<tc>, window_params = [{transform_indices = @transform_0, window_bounds = array<i64: 4, 256>}, {transform_indices = @transform_1, window_bounds = array<i64: 1, 4, 256>}, {transform_indices = @transform_2, window_bounds = array<i64: 1, 12, 256>}, {transform_indices = @transform_3, window_bounds = array<i64: 1, 12, 256>}, {transform_indices = @transform_4, window_bounds = array<i64: 1, 12, 256>}]} {
    %c0 = arith.constant 0 : index
    %c0_0 = arith.constant 0 : index
    %0 = vector.load %arg2[%c0, %c0_0] : memref<4x256xf32, #tpu.memory_space<vmem>>, vector<4x256xf32>
    %c0_1 = arith.constant 0 : index
    %c0_2 = arith.constant 0 : index
    %c0_3 = arith.constant 0 : index
    %1 = vector.load %arg3[%c0_1, %c0_2, %c0_3] : memref<1x4x256xf32, #tpu.memory_space<vmem>>, vector<1x4x256xf32>
    %2 = vector.shape_cast %1 : vector<1x4x256xf32> to vector<4x256xf32>
    %3 = arith.subf %0, %2 : vector<4x256xf32>
    %4 = vector.extract_strided_slice %3 {offsets = [0, 0], sizes = [1, 256], strides = [1, 1]} : vector<4x256xf32> to vector<1x256xf32>
    %5 = vector.shape_cast %4 : vector<1x256xf32> to vector<1x256xf32>
    %6 = vector.broadcast %5 : vector<1x256xf32> to vector<3x256xf32>
    %7 = vector.extract_strided_slice %3 {offsets = [1, 0], sizes = [1, 256], strides = [1, 1]} : vector<4x256xf32> to vector<1x256xf32>
    %8 = vector.shape_cast %7 : vector<1x256xf32> to vector<1x256xf32>
    %9 = vector.broadcast %8 : vector<1x256xf32> to vector<3x256xf32>
    %10 = vector.extract_strided_slice %3 {offsets = [2, 0], sizes = [1, 256], strides = [1, 1]} : vector<4x256xf32> to vector<1x256xf32>
    %11 = vector.shape_cast %10 : vector<1x256xf32> to vector<1x256xf32>
    %12 = vector.broadcast %11 : vector<1x256xf32> to vector<3x256xf32>
    %13 = vector.extract_strided_slice %3 {offsets = [3, 0], sizes = [1, 256], strides = [1, 1]} : vector<4x256xf32> to vector<1x256xf32>
    %14 = vector.shape_cast %13 : vector<1x256xf32> to vector<1x256xf32>
    %15 = vector.broadcast %14 : vector<1x256xf32> to vector<3x256xf32>
    %16 = tpu.concatenate %6, %9, %12, %15 in 0 : vector<3x256xf32>, vector<3x256xf32>, vector<3x256xf32>, vector<3x256xf32> -> vector<12x256xf32>
    %c0_4 = arith.constant 0 : index
    %c0_5 = arith.constant 0 : index
    %c0_6 = arith.constant 0 : index
    %17 = vector.load %arg4[%c0_4, %c0_5, %c0_6] : memref<1x12x256xbf16, #tpu.memory_space<vmem>>, vector<1x12x256xbf16>
    %18 = vector.shape_cast %17 : vector<1x12x256xbf16> to vector<12x256xbf16>
    %cst = arith.constant 0.000000e+00 : f32
    %19 = vector.broadcast %cst : f32 to vector<12x256xf32>
    %20 = arith.cmpf ogt, %16, %19 : vector<12x256xf32>
    %cst_7 = arith.constant 0.000000e+00 : bf16
    %21 = vector.broadcast %cst_7 : bf16 to vector<12x256xbf16>
    %22 = arith.select %20, %18, %21 : vector<12x256xi1>, vector<12x256xbf16>
    %c0_8 = arith.constant 0 : index
    %c0_9 = arith.constant 0 : index
    %c0_10 = arith.constant 0 : index
    %23 = vector.load %arg5[%c0_8, %c0_9, %c0_10] : memref<1x12x256xbf16, #tpu.memory_space<vmem>>, vector<1x12x256xbf16>
    %24 = vector.shape_cast %23 : vector<1x12x256xbf16> to vector<12x256xbf16>
    %25 = vector.shape_cast %22 : vector<12x256xbf16> to vector<1x12x256xbf16>
    tpu.vector_store %arg5[%c0_8, %c0_9, %c0_10], %25 {strides = array<i32>} : memref<1x12x256xbf16, #tpu.memory_space<vmem>>, vector<1x12x256xbf16>,
    %26 = arith.subf %18, %22 : vector<12x256xbf16>
    %c0_11 = arith.constant 0 : index
    %c0_12 = arith.constant 0 : index
    %c0_13 = arith.constant 0 : index
    %27 = vector.load %arg6[%c0_11, %c0_12, %c0_13] : memref<1x12x256xbf16, #tpu.memory_space<vmem>>, vector<1x12x256xbf16>
    %28 = vector.shape_cast %27 : vector<1x12x256xbf16> to vector<12x256xbf16>
    %29 = vector.shape_cast %26 : vector<12x256xbf16> to vector<1x12x256xbf16>
    tpu.vector_store %arg6[%c0_11, %c0_12, %c0_13], %29 {strides = array<i32>} : memref<1x12x256xbf16, #tpu.memory_space<vmem>>, vector<1x12x256xbf16>,
    return
  }
  func.func @transform_0(%arg0: i32, %arg1: i32) -> (i32, i32) {
    %c0_i32 = arith.constant 0 : i32
    %c0_i32_0 = arith.constant 0 : i32
    return %arg1, %c0_i32 : i32, i32
  }
  func.func @transform_1(%arg0: i32, %arg1: i32) -> (i32, i32, i32) {
    %c0_i32 = arith.constant 0 : i32
    %c0_i32_0 = arith.constant 0 : i32
    return %arg0, %arg1, %c0_i32 : i32, i32, i32
  }
  func.func @transform_2(%arg0: i32, %arg1: i32) -> (i32, i32, i32) {
    %c0_i32 = arith.constant 0 : i32
    %c0_i32_0 = arith.constant 0 : i32
    return %arg0, %arg1, %c0_i32 : i32, i32, i32
  }
  func.func @transform_3(%arg0: i32, %arg1: i32) -> (i32, i32, i32) {
    %c0_i32 = arith.constant 0 : i32
    %c0_i32_0 = arith.constant 0 : i32
    return %arg0, %arg1, %c0_i32 : i32, i32, i32
  }
  func.func @transform_4(%arg0: i32, %arg1: i32) -> (i32, i32, i32) {
    %c0_i32 = arith.constant 0 : i32
    %c0_i32_0 = arith.constant 0 : i32
    return %arg0, %arg1, %c0_i32 : i32, i32, i32
  }
}

</mosaic_0001>

<llo_original>
// kernel: tpu_custom_call.1
$region0: #{tpu_custom_call.1}
  #allocation0 [shape = 'u32[]', space=smem, size = 0x4, offset = 0x4, fixed_abs, tag = 'smem constant byte address 0x4 - core index']
  #allocation1 [shape = 'u32[144,128]{1,0:T(1,128)}', space=vmem, size = 0x12000, scoped, tag = 'internal scratch']
  %s0 = inlined_call_operand.vmem [shape: f32[4,256], index: 0, kind: input, shape index: {}]
  %s1 = inlined_call_operand.vmem [shape: f32[2,4,256], index: 1, kind: input, shape index: {}]
  %s2 = inlined_call_operand.vmem [shape: bf16[2,12,256], index: 2, kind: input, shape index: {}]
  %s3 = inlined_call_operand.vmem [shape: bf16[2,12,256], index: 3, kind: output, shape index: {0}]
  %s4 = inlined_call_operand.vmem [shape: bf16[2,12,256], index: 4, kind: output, shape index: {1}]
  %5 = xla_tuple %s3, %s4
  %s6 = sld [smem:[#allocation0]]
  $region53: #{tpu_custom_call.1} parent=0
    _
  %s8 = ssub.s32 1, %s6
  %s9 = scalar_select 0, %s8, %s6
  loop: start=0, step=1, limit=4
  $region2: #{tpu_custom_call.1} parent=0 // loop_pre_header
    _
  $region3: #{tpu_custom_call.1} parent=0 // loop_header
    %s11 = sphi 0, %s15
    %p12 = scmp.ge.s32.totalorder %s11, 4
    %s18 = sphi 0, %s30
    %s19 = sphi 0, %s26
    %s20 = sphi 0, %s18
    %s21 = sphi 0, %s19
    %s22 = sphi 0, %s20
    %s23 = sphi 0, %s21
    %s33 = sphi 0, %s35
    %s36 = sphi 0, %s33
    %s37 = sphi 0, %s36
    %s53 = sphi 0, %s37
    %s61 = sphi 0, %s63
    %s64 = sphi 0, %s61
    %s65 = sphi 0, %s64
    %s81 = sphi 0, %s65
    %s89 = sphi 0, %s91
    %s92 = sphi 0, %s89
    %s93 = sphi 0, %s92
    %s109 = sphi 0, %s93
    %s117 = sphi 0, %s119
    %s120 = sphi 0, %s117
    %s121 = sphi 0, %s120
    %s137 = sphi 0, %s121
    %s145 = sphi 0, %s147
    %s148 = sphi 0, %s145
    %s149 = sphi 0, %s148
    %s165 = sphi 0, %s149
  $region4: #{tpu_custom_call.1} parent=0 // loop_header_branch
    %14 = sbr.rel (%p12) target = $region8
  $region5: #{tpu_custom_call.1} parent=0 // loop_body
    %s16 = ssub.s32 %s11, 1
    %s17 = ssub.s32 %s11, 2
    %s24 = sadd.s32 1, %s19
    %p25 = scmp.ge.s32.totalorder %s24, 1
    %s26 = scalar_select %p25, 0, %s24
    %s27 = sadd.s32 1, %s18
    %s28 = scalar_select %p25, %s27, %s18
    %p29 = scmp.ge.s32.totalorder %s28, 2
    %s30 = scalar_select %p29, 0, %s28
    %s31 = ssub.s32 %s19, %s26
    %p32 = scmp.eq.s32.totalorder %s31, 0
    %s34 = sadd.s32 %s33, 1
    %s35 = scalar_select %p32, %s33, %s34
    %p38 = pneg %p32
    %p39 = scmp.eq.s32.totalorder %s11, 1
    %p40 = por %p38, %p39
    %p41 = scmp.ne.s32.totalorder %s33, %s36
    %p42 = scmp.eq.s32.totalorder %s11, 0
    %p43 = por %p41, %p42
    %p44 = scmp.ne.s32.totalorder %s33, %s36
    %p45 = scmp.eq.s32.totalorder %s16, 1
    %p46 = por %p44, %p45
    %p47 = scmp.ne.s32.totalorder %s36, %s37
    %p48 = scmp.eq.s32.totalorder %s16, 0
    %p49 = por %p47, %p48
    %p50 = scmp.ne.s32.totalorder %s36, %s37
    %p51 = scmp.eq.s32.totalorder %s17, 1
    %p52 = por %p50, %p51
    %p54 = scmp.ne.s32.totalorder %s37, %s53
    %p55 = scmp.eq.s32.totalorder %s17, 0
    %p56 = por %p54, %p55
    %s57 = ssub.s32 %s18, %s30
    %s58 = ssub.s32 %s19, %s26
    %s59 = sor.u32 %s57, %s58
    %p60 = scmp.eq.s32.totalorder %s59, 0
    %s62 = sadd.s32 %s61, 1
    %s63 = scalar_select %p60, %s61, %s62
    %p66 = pneg %p60
    %p67 = scmp.eq.s32.totalorder %s11, 1
    %p68 = por %p66, %p67
    %p69 = scmp.ne.s32.totalorder %s61, %s64
    %p70 = scmp.eq.s32.totalorder %s11, 0
    %p71 = por %p69, %p70
    %p72 = scmp.ne.s32.totalorder %s61, %s64
    %p73 = scmp.eq.s32.totalorder %s16, 1
    %p74 = por %p72, %p73
    %p75 = scmp.ne.s32.totalorder %s64, %s65
    %p76 = scmp.eq.s32.totalorder %s16, 0
    %p77 = por %p75, %p76
    %p78 = scmp.ne.s32.totalorder %s64, %s65
    %p79 = scmp.eq.s32.totalorder %s17, 1
    %p80 = por %p78, %p79
    %p82 = scmp.ne.s32.totalorder %s65, %s81
    %p83 = scmp.eq.s32.totalorder %s17, 0
    %p84 = por %p82, %p83
    %s85 = ssub.s32 %s18, %s30
    %s86 = ssub.s32 %s19, %s26
    %s87 = sor.u32 %s85, %s86
    %p88 = scmp.eq.s32.totalorder %s87, 0
    %s90 = sadd.s32 %s89, 1
    %s91 = scalar_select %p88, %s89, %s90
    %p94 = pneg %p88
    %p95 = scmp.eq.s32.totalorder %s11, 1
    %p96 = por %p94, %p95
    %p97 = scmp.ne.s32.totalorder %s89, %s92
    %p98 = scmp.eq.s32.totalorder %s11, 0
    %p99 = por %p97, %p98
    %p100 = scmp.ne.s32.totalorder %s89, %s92
    %p101 = scmp.eq.s32.totalorder %s16, 1
    %p102 = por %p100, %p101
    %p103 = scmp.ne.s32.totalorder %s92, %s93
    %p104 = scmp.eq.s32.totalorder %s16, 0
    %p105 = por %p103, %p104
    %p106 = scmp.ne.s32.totalorder %s92, %s93
    %p107 = scmp.eq.s32.totalorder %s17, 1
    %p108 = por %p106, %p107
    %p110 = scmp.ne.s32.totalorder %s93, %s109
    %p111 = scmp.eq.s32.totalorder %s17, 0
    %p112 = por %p110, %p111
    %s113 = ssub.s32 %s18, %s30
    %s114 = ssub.s32 %s19, %s26
    %s115 = sor.u32 %s113, %s114
    %p116 = scmp.eq.s32.totalorder %s115, 0
    %s118 = sadd.s32 %s117, 1
    %s119 = scalar_select %p116, %s117, %s118
    %p122 = pneg %p116
    %p123 = scmp.eq.s32.totalorder %s11, 1
    %p124 = por %p122, %p123
    %p125 = scmp.ne.s32.totalorder %s117, %s120
    %p126 = scmp.eq.s32.totalorder %s11, 0
    %p127 = por %p125, %p126
    %p128 = scmp.ne.s32.totalorder %s117, %s120
    %p129 = scmp.eq.s32.totalorder %s16, 1
    %p130 = por %p128, %p129
    %p131 = scmp.ne.s32.totalorder %s120, %s121
    %p132 = scmp.eq.s32.totalorder %s16, 0
    %p133 = por %p131, %p132
    %p134 = scmp.ne.s32.totalorder %s120, %s121
    %p135 = scmp.eq.s32.totalorder %s17, 1
    %p136 = por %p134, %p135
    %p138 = scmp.ne.s32.totalorder %s121, %s137
    %p139 = scmp.eq.s32.totalorder %s17, 0
    %p140 = por %p138, %p139
    %s141 = ssub.s32 %s18, %s30
    %s142 = ssub.s32 %s19, %s26
    %s143 = sor.u32 %s141, %s142
    %p144 = scmp.eq.s32.totalorder %s143, 0
    %s146 = sadd.s32 %s145, 1
    %s147 = scalar_select %p144, %s145, %s146
    %p150 = pneg %p144
    %p151 = scmp.eq.s32.totalorder %s11, 1
    %p152 = por %p150, %p151
    %p153 = scmp.ne.s32.totalorder %s145, %s148
    %p154 = scmp.eq.s32.totalorder %s11, 0
    %p155 = por %p153, %p154
    %p156 = scmp.ne.s32.totalorder %s145, %s148
    %p157 = scmp.eq.s32.totalorder %s16, 1
    %p158 = por %p156, %p157
    %p159 = scmp.ne.s32.totalorder %s148, %s149
    %p160 = scmp.eq.s32.totalorder %s16, 0
    %p161 = por %p159, %p160
    %p162 = scmp.ne.s32.totalorder %s148, %s149
    %p163 = scmp.eq.s32.totalorder %s17, 1
    %p164 = por %p162, %p163
    %p166 = scmp.ne.s32.totalorder %s149, %s165
    %p167 = scmp.eq.s32.totalorder %s17, 0
    %p168 = por %p166, %p167
    %p169 = scmp.le.s32.totalorder 1, %s11
    %p170 = scmp.lt.s32.totalorder %s11, 3
    %p171 = pnand %p169, %p170
    %p172 = pneg %p171
    // Predicated region
    $region9: #{tpu_custom_call.1} parent=5 // pred_check
      _
    $region10: #{tpu_custom_call.1} parent=5 // pred_check_branch
      %174 = sbr.rel (%p171) target = $region12
    $region11: #{tpu_custom_call.1} parent=5 // pred_region
      %s175 = ssub.s32 %s11, 1
      // Predicated region
      $region13: #{tpu_custom_call.1} parent=11 // pred_check
        %p176 = pneg %p49
      $region14: #{tpu_custom_call.1} parent=11 // pred_check_branch
        %178 = sbr.rel (%p176) target = $region16
      $region15: #{tpu_custom_call.1} parent=11 // pred_region
        %p179 = scmp.lt.s32.totalorder %s21, 0
        %s180 = scalar_select %p179, %s21, 0
        %s181 = smul.addr %s180, 2
        %s182 = smul.addr %s181, 4
        %s183 = scalar_lea.vmem %s0, %s182
      $region16: #{tpu_custom_call.1} parent=11 // pred_fallthru
        _
    $region12: #{tpu_custom_call.1} parent=5 // pred_fallthru
      _
    %p184 = scmp.lt.s32.totalorder %s11, 2
    // Predicated region
    $region17: #{tpu_custom_call.1} parent=5 // pred_check
      %p185 = pneg %p184
    $region18: #{tpu_custom_call.1} parent=5 // pred_check_branch
      %187 = sbr.rel (%p185) target = $region20
    $region19: #{tpu_custom_call.1} parent=5 // pred_region
      // Predicated region
      $region21: #{tpu_custom_call.1} parent=19 // pred_check
        %p188 = pneg %p71
      $region22: #{tpu_custom_call.1} parent=19 // pred_check_branch
        %190 = sbr.rel (%p188) target = $region24
      $region23: #{tpu_custom_call.1} parent=19 // pred_region
        %p191 = scmp.lt.s32.totalorder %s18, 1
        %s192 = scalar_select %p191, %s18, 1
        %p193 = scmp.lt.s32.totalorder %s19, 0
        %s194 = scalar_select %p193, %s19, 0
        %s195 = smul.addr %s194, 2
        %s196 = smul.addr %s192, 2
        %s197 = sadd.s32 %s195, %s196
        %s198 = smul.addr %s197, 4
        %s199 = scalar_lea.vmem %s1, %s198
      $region24: #{tpu_custom_call.1} parent=19 // pred_fallthru
        _
      // Predicated region
      $region25: #{tpu_custom_call.1} parent=19 // pred_check
        %p200 = pneg %p99
      $region26: #{tpu_custom_call.1} parent=19 // pred_check_branch
        %202 = sbr.rel (%p200) target = $region28
      $region27: #{tpu_custom_call.1} parent=19 // pred_region
        %s203 = smul.u32 2, %s19
        %p204 = scmp.lt.s32.totalorder %s18, 1
        %s205 = scalar_select %p204, %s18, 1
        %p206 = scmp.lt.s32.totalorder %s203, 1
        %s207 = scalar_select %p206, %s203, 1
        %s208 = smul.addr %s207, 2
        %s209 = smul.addr %s205, 4
        %s210 = sadd.s32 %s208, %s209
        %s211 = smul.addr %s210, 4
        %s212 = scalar_lea.vmem %s2, %s211
        %s213 = smul.u32 2, %s19
      $region28: #{tpu_custom_call.1} parent=19 // pred_fallthru
        _
    $region20: #{tpu_custom_call.1} parent=5 // pred_fallthru
      _
    %p214 = scmp.le.s32.totalorder 1, %s11
    %p215 = scmp.lt.s32.totalorder %s11, 3
    %p216 = pnand %p214, %p215
    %p217 = pneg %p216
    // Predicated region
    $region29: #{tpu_custom_call.1} parent=5 // pred_check
      _
    $region30: #{tpu_custom_call.1} parent=5 // pred_check_branch
      %219 = sbr.rel (%p216) target = $region32
    $region31: #{tpu_custom_call.1} parent=5 // pred_region
      %s220 = ssub.s32 %s11, 1
      %p221 = scmp.lt.s32.totalorder %s21, 0
      %s222 = scalar_select %p221, %s21, 0
      %s223 = smul.addr %s222, 2
      %s224 = smul.addr %s223, 4
      %s225 = scalar_lea.vmem %s0, %s224
      %p226 = pneg %p49
      %p227 = pneg %p46
      %p228 = scmp.lt.s32.totalorder %s20, 1
      %s229 = scalar_select %p228, %s20, 1
      %p230 = scmp.lt.s32.totalorder %s21, 0
      %s231 = scalar_select %p230, %s21, 0
      %s232 = smul.addr %s231, 2
      %s233 = smul.addr %s229, 2
      %s234 = sadd.s32 %s232, %s233
      %s235 = smul.addr %s234, 4
      %s236 = scalar_lea.vmem %s1, %s235
      %p237 = pneg %p77
      %p238 = pneg %p74
      %s239 = smul.u32 2, %s21
      %p240 = scmp.lt.s32.totalorder %s20, 1
      %s241 = scalar_select %p240, %s20, 1
      %p242 = scmp.lt.s32.totalorder %s239, 1
      %s243 = scalar_select %p242, %s239, 1
      %s244 = smul.addr %s243, 2
      %s245 = smul.addr %s241, 4
      %s246 = sadd.s32 %s244, %s245
      %s247 = smul.addr %s246, 4
      %s248 = scalar_lea.vmem %s2, %s247
      %p249 = pneg %p105
      %p250 = pneg %p102
      %p251 = pneg %p133
      %p252 = pneg %p130
      %s253 = smul.u32 2, %s21
      %p254 = scmp.lt.s32.totalorder %s20, 1
      %s255 = scalar_select %p254, %s20, 1
      %p256 = scmp.lt.s32.totalorder %s253, 1
      %s257 = scalar_select %p256, %s253, 1
      %s258 = smul.addr %s257, 2
      %s259 = smul.addr %s255, 4
      %s260 = sadd.s32 %s258, %s259
      %s261 = smul.addr %s260, 4
      %s262 = scalar_lea.vmem %s3, %s261
      %p263 = pneg %p161
      %p264 = pneg %p158
      %s265 = smul.u32 2, %s21
      %p266 = scmp.lt.s32.totalorder %s20, 1
      %s267 = scalar_select %p266, %s20, 1
      %p268 = scmp.lt.s32.totalorder %s265, 1
      %s269 = scalar_select %p268, %s265, 1
      %s270 = smul.addr %s269, 2
      %s271 = smul.addr %s267, 4
      %s272 = sadd.s32 %s270, %s271
      %s273 = smul.addr %s272, 4
      %s274 = scalar_lea.vmem %s4, %s273
      %p275 = scmp.lt.s32.totalorder %s21, 0
      %s276 = scalar_select %p275, %s21, 0
      %s277 = smul.addr %s276, 2
      %s278 = smul.addr %s277, 4
      %s279 = scalar_lea.vmem %s0, %s278
      %p280 = scmp.lt.s32.totalorder %s20, 1
      %s281 = scalar_select %p280, %s20, 1
      %p282 = scmp.lt.s32.totalorder %s21, 0
      %s283 = scalar_select %p282, %s21, 0
      %s284 = smul.addr %s283, 2
      %s285 = smul.addr %s281, 2
      %s286 = sadd.s32 %s284, %s285
      %s287 = smul.addr %s286, 4
      %s288 = scalar_lea.vmem %s1, %s287
      %s289 = smul.u32 2, %s21
      %p290 = scmp.lt.s32.totalorder %s20, 1
      %s291 = scalar_select %p290, %s20, 1
      %p292 = scmp.lt.s32.totalorder %s289, 1
      %s293 = scalar_select %p292, %s289, 1
      %s294 = smul.addr %s293, 2
      %s295 = smul.addr %s291, 4
      %s296 = sadd.s32 %s294, %s295
      %s297 = smul.addr %s296, 4
      %s298 = scalar_lea.vmem %s2, %s297
      %s299 = smul.u32 2, %s21
      %s300 = smul.u32 2, %s21
      %p301 = scmp.lt.s32.totalorder %s20, 1
      %s302 = scalar_select %p301, %s20, 1
      %p303 = scmp.lt.s32.totalorder %s300, 1
      %s304 = scalar_select %p303, %s300, 1
      %s305 = smul.addr %s304, 2
      %s306 = smul.addr %s302, 4
      %s307 = sadd.s32 %s305, %s306
      %s308 = smul.addr %s307, 4
      %s309 = scalar_lea.vmem %s3, %s308
      %s310 = smul.u32 2, %s21
      %s311 = smul.u32 2, %s21
      %p312 = scmp.lt.s32.totalorder %s20, 1
      %s313 = scalar_select %p312, %s20, 1
      %p314 = scmp.lt.s32.totalorder %s311, 1
      %s315 = scalar_select %p314, %s311, 1
      %s316 = smul.addr %s315, 2
      %s317 = smul.addr %s313, 4
      %s318 = sadd.s32 %s316, %s317
      %s319 = smul.addr %s318, 4
      %s320 = scalar_lea.vmem %s4, %s319
      %s321 = smul.u32 2, %s21
      %v323 = vld [vmem:[%s279] sm:$0xff]
      %v324 = vld [vmem:[%s288] sm:$0xff]
      %v325 = vsub.f32 %v323, %v324
      %v327 = vlaneseq
      %v328 = vshrl.u32 %v327, 7
      %v329 = vsub.s32 0, %v328
      %v330 = vrot.slane %v325, %v329
      %v331 = vlaneseq
      %v332 = vshrl.u32 %v331, 7
      %v333 = vsub.s32 4, %v332
      %v334 = vrot.slane %v325, %v333
      %v337 = vlaneseq
      %v338 = vshrl.u32 %v337, 7
      %v339 = vsub.s32 0, %v338
      %v340 = vrot.slane %v330, %v339
      %v341 = vlaneseq
      %v342 = vshrl.u32 %v341, 7
      %v343 = vsub.s32 0, %v342
      %v344 = vrot.slane %v334, %v343
      %v345 = vlaneseq
      %v346 = vshrl.u32 %v345, 7
      %v347 = vsub.s32 1, %v346
      %v348 = vrot.slane %v325, %v347
      %v349 = vlaneseq
      %v350 = vshrl.u32 %v349, 7
      %v351 = vsub.s32 5, %v350
      %v352 = vrot.slane %v325, %v351
      %v355 = vlaneseq
      %v356 = vshrl.u32 %v355, 7
      %v357 = vsub.s32 1, %v356
      %v358 = vrot.slane %v348, %v357
      %v359 = vlaneseq
      %v360 = vshrl.u32 %v359, 7
      %v361 = vsub.s32 1, %v360
      %v362 = vrot.slane %v352, %v361
      %v363 = vlaneseq
      %v364 = vshrl.u32 %v363, 7
      %v365 = vsub.s32 2, %v364
      %v366 = vrot.slane %v325, %v365
      %v367 = vlaneseq
      %v368 = vshrl.u32 %v367, 7
      %v369 = vsub.s32 6, %v368
      %v370 = vrot.slane %v325, %v369
      %v373 = vlaneseq
      %v374 = vshrl.u32 %v373, 7
      %v375 = vsub.s32 2, %v374
      %v376 = vrot.slane %v366, %v375
      %v377 = vlaneseq
      %v378 = vshrl.u32 %v377, 7
      %v379 = vsub.s32 2, %v378
      %v380 = vrot.slane %v370, %v379
      %v381 = vlaneseq
      %v382 = vshrl.u32 %v381, 7
      %v383 = vsub.s32 3, %v382
      %v384 = vrot.slane %v325, %v383
      %v385 = vlaneseq
      %v386 = vshrl.u32 %v385, 7
      %v387 = vsub.s32 7, %v386
      %v388 = vrot.slane %v325, %v387
      %v391 = vlaneseq
      %v392 = vshrl.u32 %v391, 7
      %v393 = vsub.s32 3, %v392
      %v394 = vrot.slane %v384, %v393
      %v395 = vlaneseq
      %v396 = vshrl.u32 %v395, 7
      %v397 = vsub.s32 3, %v396
      %v398 = vrot.slane %v388, %v397
      %vm399 = vcmask 1042432
      %v400 = vsel %vm399, %v340, %v358
      %v401 = vsel %vm399, %v344, %v362
      %vm402 = vcmask 1045504
      %v403 = vsel %vm402, %v400, %v376
      %v404 = vsel %vm402, %v401, %v380
      %vm405 = vcmask 1040384
      %v406 = vsel %vm405, %v376, %v394
      %v407 = vsel %vm405, %v380, %v398
      %v408 = vld [vmem:[%s298] sm:$0xff]
      %v409 = vld [vmem:[%s298 + $0x8] sm:$0x33]
      %vm410 = vcmp.gt.f32.partialorder %v403, 0.0
      %vm411 = vcmp.gt.f32.partialorder %v404, 0.0
      %vm412 = vcmp.gt.f32.partialorder %v406, 0.0
      %vm413 = vcmp.gt.f32.partialorder %v407, 0.0
      %vm414 = vmpackc.low %vm411, %vm410
      %vm415 = vmpackc.low %vm413, %vm412
      %v416 = vsel %vm414, %v408, 0
      %v417 = vsel %vm415, %v409, 0
      %418 = vst [vmem:[%s309] sm:$0xff] %v416
      %419 = vst [vmem:[%s309 + $0x8] sm:$0x33] %v417
      %v420 = vsub.bf16 %v408, %v416
      %v421 = vsub.bf16 %v409, %v417
      %422 = vst [vmem:[%s320] sm:$0xff] %v420
      %423 = vst [vmem:[%s320 + $0x8] sm:$0x33] %v421
      %s424 = smul.u32 2, %s21
      %p425 = scmp.lt.s32.totalorder %s20, 1
      %s426 = scalar_select %p425, %s20, 1
      %p427 = scmp.lt.s32.totalorder %s424, 1
      %s428 = scalar_select %p427, %s424, 1
      %s429 = smul.addr %s428, 2
      %s430 = smul.addr %s426, 4
      %s431 = sadd.s32 %s429, %s430
      %s432 = smul.addr %s431, 4
      %s433 = scalar_lea.vmem %s3, %s432
      %s434 = smul.u32 2, %s21
      %p435 = scmp.lt.s32.totalorder %s20, 1
      %s436 = scalar_select %p435, %s20, 1
      %p437 = scmp.lt.s32.totalorder %s434, 1
      %s438 = scalar_select %p437, %s434, 1
      %s439 = smul.addr %s438, 2
      %s440 = smul.addr %s436, 4
      %s441 = sadd.s32 %s439, %s440
      %s442 = smul.addr %s441, 4
      %s443 = scalar_lea.vmem %s4, %s442
      // Predicated region
      $region33: #{tpu_custom_call.1} parent=31 // pred_check
        %p444 = pneg %p130
      $region34: #{tpu_custom_call.1} parent=31 // pred_check_branch
        %446 = sbr.rel (%p444) target = $region36
      $region35: #{tpu_custom_call.1} parent=31 // pred_region
        %s447 = smul.u32 2, %s21
      $region36: #{tpu_custom_call.1} parent=31 // pred_fallthru
        _
      // Predicated region
      $region37: #{tpu_custom_call.1} parent=31 // pred_check
        %p448 = pneg %p158
      $region38: #{tpu_custom_call.1} parent=31 // pred_check_branch
        %450 = sbr.rel (%p448) target = $region40
      $region39: #{tpu_custom_call.1} parent=31 // pred_region
        %s451 = smul.u32 2, %s21
      $region40: #{tpu_custom_call.1} parent=31 // pred_fallthru
        _
    $region32: #{tpu_custom_call.1} parent=5 // pred_fallthru
      _
    %p452 = scmp.le.s32.totalorder 2, %s11
    // Predicated region
    $region41: #{tpu_custom_call.1} parent=5 // pred_check
      %p453 = pneg %p452
    $region42: #{tpu_custom_call.1} parent=5 // pred_check_branch
      %455 = sbr.rel (%p453) target = $region44
    $region43: #{tpu_custom_call.1} parent=5 // pred_region
      %s456 = ssub.s32 %s11, 2
      // Predicated region
      $region45: #{tpu_custom_call.1} parent=43 // pred_check
        %p457 = pneg %p136
      $region46: #{tpu_custom_call.1} parent=43 // pred_check_branch
        %459 = sbr.rel (%p457) target = $region48
      $region47: #{tpu_custom_call.1} parent=43 // pred_region
        %s460 = smul.u32 2, %s23
        %p461 = scmp.lt.s32.totalorder %s22, 1
        %s462 = scalar_select %p461, %s22, 1
        %p463 = scmp.lt.s32.totalorder %s460, 1
        %s464 = scalar_select %p463, %s460, 1
        %s465 = smul.addr %s464, 2
        %s466 = smul.addr %s462, 4
        %s467 = sadd.s32 %s465, %s466
        %s468 = smul.addr %s467, 4
        %s469 = scalar_lea.vmem %s3, %s468
      $region48: #{tpu_custom_call.1} parent=43 // pred_fallthru
        _
      // Predicated region
      $region49: #{tpu_custom_call.1} parent=43 // pred_check
        %p470 = pneg %p164
      $region50: #{tpu_custom_call.1} parent=43 // pred_check_branch
        %472 = sbr.rel (%p470) target = $region52
      $region51: #{tpu_custom_call.1} parent=43 // pred_region
        %s473 = smul.u32 2, %s23
        %p474 = scmp.lt.s32.totalorder %s22, 1
        %s475 = scalar_select %p474, %s22, 1
        %p476 = scmp.lt.s32.totalorder %s473, 1
        %s477 = scalar_select %p476, %s473, 1
        %s478 = smul.addr %s477, 2
        %s479 = smul.addr %s475, 4
        %s480 = sadd.s32 %s478, %s479
        %s481 = smul.addr %s480, 4
        %s482 = scalar_lea.vmem %s4, %s481
      $region52: #{tpu_custom_call.1} parent=43 // pred_fallthru
        _
    $region44: #{tpu_custom_call.1} parent=5 // pred_fallthru
      _
  $region6: #{tpu_custom_call.1} parent=0 // loop_footer
    %s15 = sadd.s32 1, %s11
  $region7: #{tpu_custom_call.1} parent=0 // loop_footer_branch
    %10 = sbr.rel target = $region3
  $region8: #{tpu_custom_call.1} parent=0 // loop_exit
    _

</llo_original>
